<compile_context>
chip_gen: v7x
topology: tpu7x:2x2x1
jax: 0.10.0
libtpu: 0.0.40
codegen_flags: <defaults>
</compile_context>

<pallas_src>
import functools

import jax
import jax.numpy as jnp
from jax.experimental import pallas as pl
from jax.experimental.pallas import tpu as pltpu

N_STATES = 4      # CartPole observation dim
N_ACTIONS = 2     # CartPole action dim
HIDDEN = 50

H_PAD = 128       # hidden dim padded to full lane width (zero-padded -> exact math)
MAX_TILE_B = 2048 # batch-tile cap (per-step VMEM footprint stays ~2 MiB, well under limits)


def _net_kernel(x_ref, w1_ref, b1_ref, w2_ref, b2_ref, o_ref):
    # x_ref : (TB, N_STATES) f32      w1_ref: (N_STATES, H_PAD) f32
    # b1_ref: (1, H_PAD) f32          w2_ref: (H_PAD, N_ACTIONS) bf16
    # b2_ref: (1, N_ACTIONS) f32      o_ref : (TB, N_ACTIONS) f32
    x = x_ref[...]
    w1 = w1_ref[...]

    # Layer 1 on the VPU: K=4 is far too shallow to be worth an MXU pass.
    # h starts as the (1, H_PAD) bias and broadcasts up to (TB, H_PAD).
    h = b1_ref[...]
    for k in range(N_STATES):                      # static unroll: 4 broadcast-FMA terms
        h = h + x[:, k:k + 1] * w1[k:k + 1, :]
    h = jnp.maximum(h, 0.0)                        # ReLU (f32)

    # Layer 2 on the MXU: bf16 operands, f32 accumulate, f32 bias add.
    o_ref[...] = (jnp.dot(h.astype(jnp.bfloat16), w2_ref[...],
                          preferred_element_type=jnp.float32)
                  + b2_ref[...])


def prepare_params(w1, b1, w2, b2):
    """One-time transform of torch-layout params into the kernel layout.

    w1: (HIDDEN, N_STATES), b1: (HIDDEN,), w2: (N_ACTIONS, HIDDEN), b2: (N_ACTIONS,)
    Padding lanes carry zero weights/biases, so ReLU(0)=0 and the padded hidden
    lanes contribute exactly nothing to layer 2.
    """
    w1 = jnp.asarray(w1, jnp.float32)
    b1 = jnp.asarray(b1, jnp.float32)
    w2 = jnp.asarray(w2, jnp.float32)
    b2 = jnp.asarray(b2, jnp.float32)

    w1t_pad = jnp.zeros((N_STATES, H_PAD), jnp.float32).at[:, :HIDDEN].set(w1.T)
    b1_pad = jnp.zeros((1, H_PAD), jnp.float32).at[0, :HIDDEN].set(b1)
    w2t_pad = (jnp.zeros((H_PAD, N_ACTIONS), jnp.float32)
               .at[:HIDDEN, :].set(w2.T)).astype(jnp.bfloat16)   # bf16 MXU operand
    b2_row = b2.reshape(1, N_ACTIONS)
    return w1t_pad, b1_pad, w2t_pad, b2_row


def _round_up(a, m):
    return ((a + m - 1) // m) * m


@jax.jit
def net_forward(x, params):
    """Forward pass of DQN Net.

    x      : (B, N_STATES) float32
    params : output of prepare_params()
    returns (B, N_ACTIONS) float32 Q-values
    """
    w1t, b1r, w2t, b2r = params
    x = jnp.asarray(x, jnp.float32)
    B = x.shape[0]

    if B <= 64:
        # Latency path (online action selection): one grid step, no pipeline overhead.
        tile_b = B
    else:
        # >= 2 parallel steps so v7x can shard across both TensorCores; cap keeps the
        # step count low (and per-step fixed overhead small) on single-TC v5e/v6e.
        tile_b = min(MAX_TILE_B, _round_up(pl.cdiv(B, 2), 8))
    grid = (pl.cdiv(B, tile_b),)

    return pl.pallas_call(
        _net_kernel,
        out_shape=jax.ShapeDtypeStruct((B, N_ACTIONS), jnp.float32),
        grid=grid,
        in_specs=[
            pl.BlockSpec((tile_b, N_STATES), lambda i: (i, 0)),    # x tile
            pl.BlockSpec((N_STATES, H_PAD), lambda i: (0, 0)),     # w1^T (grid-invariant)
            pl.BlockSpec((1, H_PAD), lambda i: (0, 0)),            # b1
            pl.BlockSpec((H_PAD, N_ACTIONS), lambda i: (0, 0)),    # w2^T (bf16)
            pl.BlockSpec((1, N_ACTIONS), lambda i: (0, 0)),        # b2
        ],
        out_specs=pl.BlockSpec((tile_b, N_ACTIONS), lambda i: (i, 0)),
        compiler_params=pltpu.CompilerParams(
            dimension_semantics=("parallel",)),
    )(x, w1t, b1r, w2t, b2r)


def init_params(key):
    """Init mirroring the torch module: weights ~ N(0, 0.1); biases use torch Linear's
    default U(-1/sqrt(fan_in), 1/sqrt(fan_in))."""
    k1, k2, k3, k4 = jax.random.split(key, 4)
    w1 = 0.1 * jax.random.normal(k1, (HIDDEN, N_STATES), jnp.float32)
    w2 = 0.1 * jax.random.normal(k2, (N_ACTIONS, HIDDEN), jnp.float32)
    bound1 = 1.0 / jnp.sqrt(jnp.float32(N_STATES))
    bound2 = 1.0 / jnp.sqrt(jnp.float32(HIDDEN))
    b1 = jax.random.uniform(k3, (HIDDEN,), jnp.float32, -bound1, bound1)
    b2 = jax.random.uniform(k4, (N_ACTIONS,), jnp.float32, -bound2, bound2)
    return w1, b1, w2, b2


def _reference(x, w1, b1, w2, b2):
    return jnp.maximum(x @ w1.T + b1, 0.0) @ w2.T + b2


if __name__ == "__main__":
    key = jax.random.PRNGKey(0)
    kx, kp = jax.random.split(key)

    w1, b1, w2, b2 = init_params(kp)
    params = prepare_params(w1, b1, w2, b2)   # hoisted: done once, outside hot path

    # bf16 layer-2 operands -> loosened tolerance vs. the f32 reference.
    ATOL = RTOL = 2e-2

    # 1) Small online-inference batch (single grid step, latency path).
    B_small = 2
    x_small = jax.random.normal(kx, (B_small, N_STATES), jnp.float32)
    out_small = jax.block_until_ready(net_forward(x_small, params))
    assert out_small.shape == (B_small, N_ACTIONS)
    assert jnp.allclose(out_small, _reference(x_small, w1, b1, w2, b2),
                        atol=ATOL, rtol=RTOL)

    # 2) Training-style batch (2 parallel grid steps, exact multiple of the tile).
    B_big = 1024
    x_big = jax.random.normal(kx, (B_big, N_STATES), jnp.float32)
    out_big = jax.block_until_ready(net_forward(x_big, params))
    assert out_big.shape == (B_big, N_ACTIONS)
    assert jnp.allclose(out_big, _reference(x_big, w1, b1, w2, b2),
                        atol=ATOL, rtol=RTOL)

    # 3) Ragged batch (B not a multiple of tile_b) to exercise the partial last block.
    B_rag = 100
    x_rag = jax.random.normal(kx, (B_rag, N_STATES), jnp.float32)
    out_rag = jax.block_until_ready(net_forward(x_rag, params))
    assert out_rag.shape == (B_rag, N_ACTIONS)
    assert jnp.allclose(out_rag, _reference(x_rag, w1, b1, w2, b2),
                        atol=ATOL, rtol=RTOL)

    print("KERNEL_OK")
</pallas_src>

<mosaic_0001>
module attributes {stable_mosaic.version = 11 : i64} {
  func.func @_net_kernel(%arg0: i32, %arg1: memref<2x4xf32, #tpu.memory_space<vmem>>, %arg2: memref<4x128xf32, #tpu.memory_space<vmem>>, %arg3: memref<1x128xf32, #tpu.memory_space<vmem>>, %arg4: memref<128x2xbf16, #tpu.memory_space<vmem>>, %arg5: memref<1x2xf32, #tpu.memory_space<vmem>>, %arg6: memref<2x2xf32, #tpu.memory_space<vmem>>) attributes {dimension_semantics = [#tpu.dimension_semantics<parallel>], iteration_bounds = array<i64: 1>, scalar_prefetch = 0 : i64, scratch_operands = 0 : i64, tpu.core_type = #tpu.core_type<tc>, window_params = [{transform_indices = @transform_0, window_bounds = array<i64: 2, 4>}, {pipeline_mode = #tpu.pipeline_mode<synchronous>, transform_indices = @transform_1, window_bounds = array<i64: 4, 128>}, {pipeline_mode = #tpu.pipeline_mode<synchronous>, transform_indices = @transform_2, window_bounds = array<i64: 1, 128>}, {pipeline_mode = #tpu.pipeline_mode<synchronous>, transform_indices = @transform_3, window_bounds = array<i64: 128, 2>}, {pipeline_mode = #tpu.pipeline_mode<synchronous>, transform_indices = @transform_4, window_bounds = array<i64: 1, 2>}, {transform_indices = @transform_5, window_bounds = array<i64: 2, 2>}]} {
    %c0 = arith.constant 0 : index
    %c0_0 = arith.constant 0 : index
    %0 = vector.load %arg1[%c0, %c0_0] : memref<2x4xf32, #tpu.memory_space<vmem>>, vector<2x4xf32>
    %c0_1 = arith.constant 0 : index
    %c0_2 = arith.constant 0 : index
    %1 = vector.load %arg2[%c0_1, %c0_2] : memref<4x128xf32, #tpu.memory_space<vmem>>, vector<4x128xf32>
    %c0_3 = arith.constant 0 : index
    %c0_4 = arith.constant 0 : index
    %2 = vector.load %arg3[%c0_3, %c0_4] : memref<1x128xf32, #tpu.memory_space<vmem>>, vector<1x128xf32>
    %3 = vector.extract_strided_slice %0 {offsets = [0, 0], sizes = [2, 1], strides = [1, 1]} : vector<2x4xf32> to vector<2x1xf32>
    %4 = vector.extract_strided_slice %1 {offsets = [0, 0], sizes = [1, 128], strides = [1, 1]} : vector<4x128xf32> to vector<1x128xf32>
    %5 = vector.broadcast %3 : vector<2x1xf32> to vector<2x128xf32>
    %6 = vector.broadcast %4 : vector<1x128xf32> to vector<2x128xf32>
    %7 = arith.mulf %5, %6 : vector<2x128xf32>
    %8 = vector.broadcast %2 : vector<1x128xf32> to vector<2x128xf32>
    %9 = arith.addf %8, %7 : vector<2x128xf32>
    %10 = vector.extract_strided_slice %0 {offsets = [0, 1], sizes = [2, 1], strides = [1, 1]} : vector<2x4xf32> to vector<2x1xf32>
    %11 = vector.extract_strided_slice %1 {offsets = [1, 0], sizes = [1, 128], strides = [1, 1]} : vector<4x128xf32> to vector<1x128xf32>
    %12 = vector.broadcast %10 : vector<2x1xf32> to vector<2x128xf32>
    %13 = vector.broadcast %11 : vector<1x128xf32> to vector<2x128xf32>
    %14 = arith.mulf %12, %13 : vector<2x128xf32>
    %15 = arith.addf %9, %14 : vector<2x128xf32>
    %16 = vector.extract_strided_slice %0 {offsets = [0, 2], sizes = [2, 1], strides = [1, 1]} : vector<2x4xf32> to vector<2x1xf32>
    %17 = vector.extract_strided_slice %1 {offsets = [2, 0], sizes = [1, 128], strides = [1, 1]} : vector<4x128xf32> to vector<1x128xf32>
    %18 = vector.broadcast %16 : vector<2x1xf32> to vector<2x128xf32>
    %19 = vector.broadcast %17 : vector<1x128xf32> to vector<2x128xf32>
    %20 = arith.mulf %18, %19 : vector<2x128xf32>
    %21 = arith.addf %15, %20 : vector<2x128xf32>
    %22 = vector.extract_strided_slice %0 {offsets = [0, 3], sizes = [2, 1], strides = [1, 1]} : vector<2x4xf32> to vector<2x1xf32>
    %23 = vector.extract_strided_slice %1 {offsets = [3, 0], sizes = [1, 128], strides = [1, 1]} : vector<4x128xf32> to vector<1x128xf32>
    %24 = vector.broadcast %22 : vector<2x1xf32> to vector<2x128xf32>
    %25 = vector.broadcast %23 : vector<1x128xf32> to vector<2x128xf32>
    %26 = arith.mulf %24, %25 : vector<2x128xf32>
    %27 = arith.addf %21, %26 : vector<2x128xf32>
    %cst = arith.constant 0.000000e+00 : f32
    %28 = vector.broadcast %cst : f32 to vector<2x128xf32>
    %29 = arith.maximumf %27, %28 : vector<2x128xf32>
    %30 = arith.truncf %29 : vector<2x128xf32> to vector<2x128xbf16>
    %c0_5 = arith.constant 0 : index
    %c0_6 = arith.constant 0 : index
    %31 = vector.load %arg4[%c0_5, %c0_6] : memref<128x2xbf16, #tpu.memory_space<vmem>>, vector<128x2xbf16>
    %cst_7 = arith.constant dense<0.000000e+00> : vector<2x2xf32>
    %32 = tpu.matmul %30, %31, %cst_7 {dimension_numbers = #tpu.dot_dimension_numbers<[1], [0], [0], [1], [0, 0, 1, 1], [], []>} : vector<2x128xbf16>, vector<128x2xbf16>, vector<2x2xf32> -> vector<2x2xf32>
    %c0_8 = arith.constant 0 : index
    %c0_9 = arith.constant 0 : index
    %33 = vector.load %arg5[%c0_8, %c0_9] : memref<1x2xf32, #tpu.memory_space<vmem>>, vector<1x2xf32>
    %34 = vector.broadcast %33 : vector<1x2xf32> to vector<2x2xf32>
    %35 = arith.addf %32, %34 : vector<2x2xf32>
    %c0_10 = arith.constant 0 : index
    %c0_11 = arith.constant 0 : index
    %36 = vector.load %arg6[%c0_10, %c0_11] : memref<2x2xf32, #tpu.memory_space<vmem>>, vector<2x2xf32>
    tpu.vector_store %arg6[%c0_10, %c0_11], %35 {strides = array<i32>} : memref<2x2xf32, #tpu.memory_space<vmem>>, vector<2x2xf32>,
    return
  }
  func.func @transform_0(%arg0: i32) -> (i32, i32) {
    %c0_i32 = arith.constant 0 : i32
    %c0_i32_0 = arith.constant 0 : i32
    return %arg0, %c0_i32 : i32, i32
  }
  func.func @transform_1(%arg0: i32) -> (i32, i32) {
    %c0_i32 = arith.constant 0 : i32
    %c0_i32_0 = arith.constant 0 : i32
    %c0_i32_1 = arith.constant 0 : i32
    return %c0_i32, %c0_i32_0 : i32, i32
  }
  func.func @transform_2(%arg0: i32) -> (i32, i32) {
    %c0_i32 = arith.constant 0 : i32
    %c0_i32_0 = arith.constant 0 : i32
    %c0_i32_1 = arith.constant 0 : i32
    return %c0_i32, %c0_i32_0 : i32, i32
  }
  func.func @transform_3(%arg0: i32) -> (i32, i32) {
    %c0_i32 = arith.constant 0 : i32
    %c0_i32_0 = arith.constant 0 : i32
    %c0_i32_1 = arith.constant 0 : i32
    return %c0_i32, %c0_i32_0 : i32, i32
  }
  func.func @transform_4(%arg0: i32) -> (i32, i32) {
    %c0_i32 = arith.constant 0 : i32
    %c0_i32_0 = arith.constant 0 : i32
    %c0_i32_1 = arith.constant 0 : i32
    return %c0_i32, %c0_i32_0 : i32, i32
  }
  func.func @transform_5(%arg0: i32) -> (i32, i32) {
    %c0_i32 = arith.constant 0 : i32
    %c0_i32_0 = arith.constant 0 : i32
    return %arg0, %c0_i32 : i32, i32
  }
}

</mosaic_0001>

<llo_original>
// kernel: net_forward.1
$region0: #{net_forward.1}
  #allocation0 [shape = 'u32[]', space=smem, size = 0x4, offset = 0x4, fixed_abs, tag = 'smem constant byte address 0x4 - core index']
  #allocation1 [shape = 'u32[144,128]{1,0:T(1,128)}', space=vmem, size = 0x12000, scoped, tag = 'internal scratch']
  %s0 = inlined_call_operand.vmem [shape: f32[2,4], index: 0, kind: input, shape index: {}]
  %s1 = inlined_call_operand.vmem [shape: f32[4,128], index: 1, kind: input, shape index: {}]
  %s2 = inlined_call_operand.vmem [shape: f32[1,128], index: 2, kind: input, shape index: {}]
  %s3 = inlined_call_operand.vmem [shape: bf16[128,2], index: 3, kind: input, shape index: {}]
  %s4 = inlined_call_operand.vmem [shape: f32[1,2], index: 4, kind: input, shape index: {}]
  %s5 = inlined_call_operand.hbm [shape: f32[2,2], index: 5, kind: output, shape index: {}]
  %s6 = sld [smem:[#allocation0]]
  $region30: #{net_forward.1} parent=0
    _
  %s8 = ssub.s32 1, %s6
  %s9 = scalar_select 0, %s8, %s6
  $region1: #{net_forward.1} parent=0
    #allocation2 [shape = 'u8[1024]{0}', space=vmem, size = 0x400, scoped, tag = 'output window, operand 0, single buffered']
    #allocation3 [shape = 's32[1]{0}', space=sflag, size = 0x4, scoped, tag = 'scoped memory for net_forward.1']
    %10 = vsyncpa [#allocation3], 0
    // Predicated region
    $region2: #{net_forward.1} parent=1 // pred_check
      _
    $region3: #{net_forward.1} parent=1 // pred_check_branch
      %12 = sbr.rel (0) target = $region5
    $region4: #{net_forward.1} parent=1 // pred_region
      _
    $region5: #{net_forward.1} parent=1 // pred_fallthru
      _
    // Predicated region
    $region6: #{net_forward.1} parent=1 // pred_check
      _
    $region7: #{net_forward.1} parent=1 // pred_check_branch
      %14 = sbr.rel (0) target = $region9
    $region8: #{net_forward.1} parent=1 // pred_region
      _
    $region9: #{net_forward.1} parent=1 // pred_fallthru
      _
    // Predicated region
    $region10: #{net_forward.1} parent=1 // pred_check
      _
    $region11: #{net_forward.1} parent=1 // pred_check_branch
      %16 = sbr.rel (0) target = $region13
    $region12: #{net_forward.1} parent=1 // pred_region
      _
    $region13: #{net_forward.1} parent=1 // pred_fallthru
      _
    // Predicated region
    $region14: #{net_forward.1} parent=1 // pred_check
      _
    $region15: #{net_forward.1} parent=1 // pred_check_branch
      %18 = sbr.rel (0) target = $region17
    $region16: #{net_forward.1} parent=1 // pred_region
      _
    $region17: #{net_forward.1} parent=1 // pred_fallthru
      _
    // Predicated region
    $region18: #{net_forward.1} parent=1 // pred_check
      _
    $region19: #{net_forward.1} parent=1 // pred_check_branch
      %20 = sbr.rel (0) target = $region21
    $region20: #{net_forward.1} parent=1 // pred_region
      _
    $region21: #{net_forward.1} parent=1 // pred_fallthru
      _
    %v22 = vld [vmem:[%s0] sm:$0x3]
    %v23 = vld [vmem:[%s1] sm:$0xf]
    %v24 = vld [vmem:[%s2] sm:$0x1]
    %26 = vset.pattern.permute.xlu0 0
    %27 = vperm.xlu0 %26, %v22
    %v28 = vpop.permute.xlu0 %27
    %v30 = vlaneseq
    %v31 = vshrl.u32 %v30, 7
    %v32 = vsub.s32 0, %v31
    %v33 = vrot.slane %v23, %v32
    %v34 = vmul.f32 %v28, %v33
    %v36 = vlaneseq
    %v37 = vshrl.u32 %v36, 7
    %v38 = vsub.s32 0, %v37
    %v39 = vrot.slane %v24, %v38
    %v41 = vadd.f32 %v39, %v34
    %42 = vset.pattern.permute.xlu0 1
    %43 = vperm.xlu0 %42, %v22
    %v44 = vpop.permute.xlu0 %43
    %v46 = vlaneseq
    %v47 = vshrl.u32 %v46, 7
    %v48 = vsub.s32 1, %v47
    %v49 = vrot.slane %v23, %v48
    %v50 = vmul.f32 %v44, %v49
    %v51 = vadd.f32 %v41, %v50
    %52 = vset.pattern.permute.xlu0 2
    %53 = vperm.xlu0 %52, %v22
    %v54 = vpop.permute.xlu0 %53
    %v56 = vlaneseq
    %v57 = vshrl.u32 %v56, 7
    %v58 = vsub.s32 2, %v57
    %v59 = vrot.slane %v23, %v58
    %v60 = vmul.f32 %v54, %v59
    %v61 = vadd.f32 %v51, %v60
    %62 = vset.pattern.permute.xlu0 3
    %63 = vperm.xlu0 %62, %v22
    %v64 = vpop.permute.xlu0 %63
    %v66 = vlaneseq
    %v67 = vshrl.u32 %v66, 7
    %v68 = vsub.s32 3, %v67
    %v69 = vrot.slane %v23, %v68
    %v70 = vmul.f32 %v64, %v69
    %v71 = vadd.f32 %v61, %v70
    %v72 = vmax.f32 %v71, 0.0
    %v73 = vpack.c.bf16 %v72, %v72
    %v74 = vld [vmem:[%s3] sm:$0xf]
    %v75 = vld [vmem:[%s3 + $0x4] sm:$0xf]
    %v76 = vld [vmem:[%s3 + $0x8] sm:$0xf]
    %v77 = vld [vmem:[%s3 + $0xc] sm:$0xf]
    %v78 = vld [vmem:[%s3 + $0x10] sm:$0xf]
    %v79 = vld [vmem:[%s3 + $0x14] sm:$0xf]
    %v80 = vld [vmem:[%s3 + $0x18] sm:$0xf]
    %v81 = vld [vmem:[%s3 + $0x1c] sm:$0xf]
    %v82 = vld [vmem:[%s3 + $0x20] sm:$0xf]
    %v83 = vld [vmem:[%s3 + $0x24] sm:$0xf]
    %v84 = vld [vmem:[%s3 + $0x28] sm:$0xf]
    %v85 = vld [vmem:[%s3 + $0x2c] sm:$0xf]
    %v86 = vld [vmem:[%s3 + $0x30] sm:$0xf]
    %v87 = vld [vmem:[%s3 + $0x34] sm:$0xf]
    %v88 = vld [vmem:[%s3 + $0x38] sm:$0xf]
    %v89 = vld [vmem:[%s3 + $0x3c] sm:$0xf]
    %v90 = vld [vmem:[%s4] sm:$0x1]
    %v92 = vlaneseq
    %v93 = vshrl.u32 %v92, 7
    %v94 = vsub.s32 0, %v93
    %v95 = vrot.slane %v90, %v94
    %v113 = vunpack.c.l.b16 %v74
    %v114 = vunpack.c.l.b16 %v75
    %v115 = vunpack.c.l.b16 %v76
    %v116 = vunpack.c.l.b16 %v77
    %v117 = vunpack.c.l.b16 %v78
    %v118 = vunpack.c.l.b16 %v79
    %v119 = vunpack.c.l.b16 %v80
    %v120 = vunpack.c.l.b16 %v81
    %v121 = vunpack.c.l.b16 %v82
    %v122 = vunpack.c.l.b16 %v83
    %v123 = vunpack.c.l.b16 %v84
    %v124 = vunpack.c.l.b16 %v85
    %v125 = vunpack.c.l.b16 %v86
    %v126 = vunpack.c.l.b16 %v87
    %v127 = vunpack.c.l.b16 %v88
    %v128 = vunpack.c.l.b16 %v89
    %v129 = vpack.c.b16 %v114, %v113
    %v130 = vpack.c.b16 %v116, %v115
    %v131 = vpack.c.b16 %v118, %v117
    %v132 = vpack.c.b16 %v120, %v119
    %v133 = vpack.c.b16 %v122, %v121
    %v134 = vpack.c.b16 %v124, %v123
    %v135 = vpack.c.b16 %v126, %v125
    %v136 = vpack.c.b16 %v128, %v127
    %145 = vmatprep.subr.bf16.mxu0 0
    %146 = vmatpush1.bf16.msra.mxu0 %v129
    %147 = vmatprep.subr.bf16.mxu0 0
    %148 = vmatpush1.bf16.msra.mxu0 %v130
    %149 = vmatprep.subr.bf16.mxu0 0
    %150 = vmatpush1.bf16.msra.mxu0 %v131
    %151 = vmatprep.subr.bf16.mxu0 0
    %152 = vmatpush1.bf16.msra.mxu0 %v132
    %153 = vmatprep.subr.bf16.mxu0 0
    %154 = vmatpush1.bf16.msra.mxu0 %v133
    %155 = vmatprep.subr.bf16.mxu0 0
    %156 = vmatpush1.bf16.msra.mxu0 %v134
    %157 = vmatprep.subr.bf16.mxu0 0
    %158 = vmatpush1.bf16.msra.mxu0 %v135
    %159 = vmatprep.subr.bf16.mxu0 0
    %160 = vmatpush1.bf16.msra.mxu0 %v136
    %161 = vmatprep.subr.bf16.mxu0 0
    %162 = vmatpush1.bf16.msra.mxu0 0
    %163 = vmatprep.subr.bf16.mxu0 0
    %164 = vmatpush1.bf16.msra.mxu0 0
    %165 = vmatprep.subr.bf16.mxu0 0
    %166 = vmatpush1.bf16.msra.mxu0 0
    %167 = vmatprep.subr.bf16.mxu0 0
    %168 = vmatpush1.bf16.msra.mxu0 0
    %169 = vmatprep.subr.bf16.mxu0 0
    %170 = vmatpush1.bf16.msra.mxu0 0
    %171 = vmatprep.subr.bf16.mxu0 0
    %172 = vmatpush1.bf16.msra.mxu0 0
    %173 = vmatprep.subr.bf16.mxu0 0
    %174 = vmatpush1.bf16.msra.mxu0 0
    %175 = vmatprep.subr.bf16.mxu0 0
    %176 = vmatpush1.bf16.msra.mxu0 0
    %177 = vmatprep.mubr.bf16.mxu0 0
    %178 = vmatmul.mubr.bf16.gmra.mrb[0].mxu0 %v73
    %v179 = vpop.f32.mrb[0].mxu0
    %v180 = vadd.f32 %v95, %v179
    %v181 = vpop.f32.mrb[0].mxu0
    %v182 = vpop.f32.mrb[0].mxu0
    %v183 = vpop.f32.mrb[0].mxu0
    %184 = vdwg.mxu0
    %vm185 = vcmask 9216
    %186 = vst.msk [vmem:[#allocation2] sm:$0x3] %vm185, %v180
    // Predicated region
    $region22: #{net_forward.1} parent=1 // pred_check
      _
    $region23: #{net_forward.1} parent=1 // pred_check_branch
      %188 = sbr.rel (0) target = $region25
    $region24: #{net_forward.1} parent=1 // pred_region
      %s190 = ssub.s32 32, 32
      %191 = vsyncadd [#allocation3], %s190
      %s193 = sshll.u32 [#allocation2], 4
      %s194 = int_to_ptr.vmem [resolvable:$true] %s193
      %196 = dma.vmem_to_hbm [thread:$0]  %s194, 32, %s5, [#allocation3]
    $region25: #{net_forward.1} parent=1 // pred_fallthru
      _
    // Predicated region
    $region26: #{net_forward.1} parent=1 // pred_check
      _
    $region27: #{net_forward.1} parent=1 // pred_check_branch
      %198 = sbr.rel (0) target = $region29
    $region28: #{net_forward.1} parent=1 // pred_region
      %199 = dma.done [#allocation3], 32
    $region29: #{net_forward.1} parent=1 // pred_fallthru
      _
    %200 = vsyncpa [#allocation3], 1

</llo_original>
